<compile_context>
chip_gen: v7x
topology: tpu7x:2x2x1
jax: 0.10.0
libtpu: 0.0.40
codegen_flags: <defaults>
</compile_context>

<pallas_src>
import jax
import jax.numpy as jnp
from jax import lax
from jax.experimental import pallas as pl
from jax.experimental.pallas import tpu as pltpu

NUM_CLASSES = 5
LANE = 128
SUBLANE = 8


def rnn_kernel(x_ref, wih_t_ref, whh_t_ref, bias_ref, wlin_t_ref, blin_ref,
               out_ref, xw_ref):
    # x_ref:      (T, Bp, D)   batch padded to a multiple of 8
    # wih_t_ref:  (D, H)       W_ih^T      (pre-transposed in wrapper)
    # whh_t_ref:  (H, H)       W_hh^T      (pre-transposed in wrapper)
    # bias_ref:   (1, H)       b_ih + b_hh (combined in wrapper)
    # wlin_t_ref: (H, 128)     W_lin^T zero-padded to lane width
    # blin_ref:   (1, 128)     T * b_lin; padding lanes hold -1e30
    # out_ref:    (Bp, 128)    log-softmax, valid in [:, :5]
    # xw_ref:     (T, Bp, H)   VMEM scratch for the hoisted input projection
    T, Bp, D = x_ref.shape
    H = whh_t_ref.shape[0]

    # One large MXU-friendly matmul for all timesteps (replaces T tiny serial
    # dots inside the latency-bound recurrence); fold in the combined RNN bias.
    xw_ref[...] = (
        jnp.dot(x_ref[...].reshape(T * Bp, D), wih_t_ref[...],
                preferred_element_type=jnp.float32)
        + bias_ref[...]
    ).reshape(T, Bp, H)

    whh_t = whh_t_ref[...]
    h0 = jnp.zeros((Bp, H), jnp.float32)
    acc0 = jnp.zeros((Bp, H), jnp.float32)

    def body(t, carry):
        h_prev, acc = carry
        h_t = jnp.tanh(
            xw_ref[t]
            + jnp.dot(h_prev, whh_t, preferred_element_type=jnp.float32))
        return h_t, acc + h_t

    # Fully unrolled short recurrence -> scheduler can overlap MXU push,
    # EUP tanh and VPU adds across adjacent steps.
    _, sum_h = lax.fori_loop(0, T, body, (h0, acc0), unroll=True)

    # sum_t (h_t @ W^T + b) == (sum_t h_t) @ W^T + T*b   (T*b folded into blin).
    logits = (jnp.dot(sum_h, wlin_t_ref[...],
                      preferred_element_type=jnp.float32)
              + blin_ref[...])                                   # (Bp, 128)

    # LogSoftmax over the class dim. Padding lanes carry -1e30 bias, so they
    # contribute exp(.) == 0 to the denominator and never win the max: the
    # first 5 columns equal a plain 5-wide log-softmax.
    m = jnp.max(logits, axis=1, keepdims=True)
    shifted = logits - m
    lse = jnp.log(jnp.sum(jnp.exp(shifted), axis=1, keepdims=True))
    out_ref[...] = shifted - lse


def rnn_forward(x, w_ih, w_hh, b_ih, b_hh, w_lin, b_lin):
    T, B, D = x.shape
    H = w_ih.shape[0]

    # ---- layout plumbing done once in the wrapper, not per kernel call ----
    Bp = max(SUBLANE, ((B + SUBLANE - 1) // SUBLANE) * SUBLANE)
    x_p = jnp.zeros((T, Bp, D), jnp.float32).at[:, :B, :].set(x)

    wih_t = jnp.asarray(w_ih, jnp.float32).T                  # (D, H)
    whh_t = jnp.asarray(w_hh, jnp.float32).T                  # (H, H)
    bias = (b_ih + b_hh).reshape(1, H).astype(jnp.float32)    # combined bias

    wlin_t = jnp.zeros((H, LANE), jnp.float32).at[:, :NUM_CLASSES].set(w_lin.T)
    blin = jnp.full((1, LANE), -1e30, jnp.float32)
    blin = blin.at[0, :NUM_CLASSES].set(jnp.float32(T) * b_lin)

    vmem = pl.BlockSpec(memory_space=pltpu.MemorySpace.VMEM)
    # NOTE: for large B, add a batch grid axis with dimension_semantics
    # ("parallel",) to split across v7x's two TensorCores, and chunk x over T
    # (Buffered BlockSpec) to stay inside v7x's 64 MiB VMEM. Unnecessary at
    # these toy shapes (everything fits in a few KiB of VMEM).
    out = pl.pallas_call(
        rnn_kernel,
        out_shape=jax.ShapeDtypeStruct((Bp, LANE), jnp.float32),
        in_specs=[vmem] * 6,
        out_specs=vmem,
        scratch_shapes=[pltpu.VMEM((T, Bp, H), jnp.float32)],
    )(x_p, wih_t, whh_t, bias, wlin_t, blin)
    return out[:B, :NUM_CLASSES]


def rnn_reference(x, w_ih, w_hh, b_ih, b_hh, w_lin, b_lin):
    T, B, D = x.shape
    H = w_ih.shape[0]
    h = jnp.zeros((B, H), jnp.float32)
    outs = []
    for t in range(T):
        h = jnp.tanh(x[t] @ w_ih.T + b_ih + h @ w_hh.T + b_hh)
        outs.append(h @ w_lin.T + b_lin)
    logits = jnp.sum(jnp.stack(outs, 0), axis=0)
    return jax.nn.log_softmax(logits, axis=1)


if __name__ == "__main__":
    T, B, D, H = 8, 2, 16, 32
    key = jax.random.PRNGKey(0)
    ks = jax.random.split(key, 8)
    bound = 1.0 / jnp.sqrt(jnp.float32(H))

    x = jax.random.normal(ks[0], (T, B, D), jnp.float32)
    w_ih = jax.random.uniform(ks[1], (H, D), jnp.float32, -bound, bound)
    w_hh = jax.random.uniform(ks[2], (H, H), jnp.float32, -bound, bound)
    b_ih = jax.random.uniform(ks[3], (H,), jnp.float32, -bound, bound)
    b_hh = jax.random.uniform(ks[4], (H,), jnp.float32, -bound, bound)
    w_lin = jax.random.uniform(ks[5], (5, H), jnp.float32, -bound, bound)
    b_lin = jax.random.uniform(ks[6], (5,), jnp.float32, -bound, bound)

    out = rnn_forward(x, w_ih, w_hh, b_ih, b_hh, w_lin, b_lin)
    jax.block_until_ready(out)

    ref = rnn_reference(x, w_ih, w_hh, b_ih, b_hh, w_lin, b_lin)
    assert out.shape == (B, 5)
    assert jnp.allclose(out, ref, atol=1e-5, rtol=1e-5), (out, ref)
    print("KERNEL_OK")
</pallas_src>

<mosaic_0001>
module attributes {stable_mosaic.version = 11 : i64} {
  func.func @rnn_kernel(%arg0: memref<8x8x16xf32, #tpu.memory_space<vmem>>, %arg1: memref<16x32xf32, #tpu.memory_space<vmem>>, %arg2: memref<32x32xf32, #tpu.memory_space<vmem>>, %arg3: memref<1x32xf32, #tpu.memory_space<vmem>>, %arg4: memref<32x128xf32, #tpu.memory_space<vmem>>, %arg5: memref<1x128xf32, #tpu.memory_space<vmem>>, %arg6: memref<8x128xf32, #tpu.memory_space<vmem>>, %arg7: memref<8x8x32xf32, #tpu.memory_space<vmem>>) attributes {dimension_semantics = [], scalar_prefetch = 0 : i64, scratch_operands = 1 : i64, tpu.core_type = #tpu.core_type<tc>} {
    %c0 = arith.constant 0 : index
    %c0_0 = arith.constant 0 : index
    %c0_1 = arith.constant 0 : index
    %0 = vector.load %arg0[%c0, %c0_0, %c0_1] : memref<8x8x16xf32, #tpu.memory_space<vmem>>, vector<8x8x16xf32>
    %1 = vector.shape_cast %0 : vector<8x8x16xf32> to vector<64x16xf32>
    %c0_2 = arith.constant 0 : index
    %c0_3 = arith.constant 0 : index
    %2 = vector.load %arg1[%c0_2, %c0_3] : memref<16x32xf32, #tpu.memory_space<vmem>>, vector<16x32xf32>
    %cst = arith.constant dense<0.000000e+00> : vector<64x32xf32>
    %3 = tpu.matmul %1, %2, %cst {dimension_numbers = #tpu.dot_dimension_numbers<[1], [0], [0], [1], [0, 0, 1, 1], [], []>} : vector<64x16xf32>, vector<16x32xf32>, vector<64x32xf32> -> vector<64x32xf32>
    %c0_4 = arith.constant 0 : index
    %c0_5 = arith.constant 0 : index
    %4 = vector.load %arg3[%c0_4, %c0_5] : memref<1x32xf32, #tpu.memory_space<vmem>>, vector<1x32xf32>
    %5 = vector.broadcast %4 : vector<1x32xf32> to vector<64x32xf32>
    %6 = arith.addf %3, %5 : vector<64x32xf32>
    %7 = vector.shape_cast %6 : vector<64x32xf32> to vector<8x8x32xf32>
    %c0_6 = arith.constant 0 : index
    %c0_7 = arith.constant 0 : index
    %c0_8 = arith.constant 0 : index
    %8 = vector.load %arg7[%c0_6, %c0_7, %c0_8] : memref<8x8x32xf32, #tpu.memory_space<vmem>>, vector<8x8x32xf32>
    tpu.vector_store %arg7[%c0_6, %c0_7, %c0_8], %7 {strides = array<i32>} : memref<8x8x32xf32, #tpu.memory_space<vmem>>, vector<8x8x32xf32>,
    %c0_9 = arith.constant 0 : index
    %c0_10 = arith.constant 0 : index
    %9 = vector.load %arg2[%c0_9, %c0_10] : memref<32x32xf32, #tpu.memory_space<vmem>>, vector<32x32xf32>
    %cst_11 = arith.constant 0.000000e+00 : f32
    %10 = vector.broadcast %cst_11 : f32 to vector<8x32xf32>
    %cst_12 = arith.constant 0.000000e+00 : f32
    %11 = vector.broadcast %cst_12 : f32 to vector<8x32xf32>
    %c0_i32 = arith.constant 0 : i32
    %12 = arith.index_cast %c0_i32 : i32 to index
    %c0_13 = arith.constant 0 : index
    %c0_14 = arith.constant 0 : index
    %13 = vector.load %arg7[%12, %c0_13, %c0_14] : memref<8x8x32xf32, #tpu.memory_space<vmem>>, vector<1x8x32xf32>
    %14 = vector.shape_cast %13 : vector<1x8x32xf32> to vector<8x32xf32>
    %cst_15 = arith.constant dense<0.000000e+00> : vector<8x32xf32>
    %15 = tpu.matmul %10, %9, %cst_15 {dimension_numbers = #tpu.dot_dimension_numbers<[1], [0], [0], [1], [0, 0, 1, 1], [], []>} : vector<8x32xf32>, vector<32x32xf32>, vector<8x32xf32> -> vector<8x32xf32>
    %16 = arith.addf %14, %15 : vector<8x32xf32>
    %17 = math.tanh %16 : vector<8x32xf32>
    %18 = arith.addf %11, %17 : vector<8x32xf32>
    %c1_i32 = arith.constant 1 : i32
    %19 = arith.index_cast %c1_i32 : i32 to index
    %c0_16 = arith.constant 0 : index
    %c0_17 = arith.constant 0 : index
    %20 = vector.load %arg7[%19, %c0_16, %c0_17] : memref<8x8x32xf32, #tpu.memory_space<vmem>>, vector<1x8x32xf32>
    %21 = vector.shape_cast %20 : vector<1x8x32xf32> to vector<8x32xf32>
    %cst_18 = arith.constant dense<0.000000e+00> : vector<8x32xf32>
    %22 = tpu.matmul %17, %9, %cst_18 {dimension_numbers = #tpu.dot_dimension_numbers<[1], [0], [0], [1], [0, 0, 1, 1], [], []>} : vector<8x32xf32>, vector<32x32xf32>, vector<8x32xf32> -> vector<8x32xf32>
    %23 = arith.addf %21, %22 : vector<8x32xf32>
    %24 = math.tanh %23 : vector<8x32xf32>
    %25 = arith.addf %18, %24 : vector<8x32xf32>
    %c2_i32 = arith.constant 2 : i32
    %26 = arith.index_cast %c2_i32 : i32 to index
    %c0_19 = arith.constant 0 : index
    %c0_20 = arith.constant 0 : index
    %27 = vector.load %arg7[%26, %c0_19, %c0_20] : memref<8x8x32xf32, #tpu.memory_space<vmem>>, vector<1x8x32xf32>
    %28 = vector.shape_cast %27 : vector<1x8x32xf32> to vector<8x32xf32>
    %cst_21 = arith.constant dense<0.000000e+00> : vector<8x32xf32>
    %29 = tpu.matmul %24, %9, %cst_21 {dimension_numbers = #tpu.dot_dimension_numbers<[1], [0], [0], [1], [0, 0, 1, 1], [], []>} : vector<8x32xf32>, vector<32x32xf32>, vector<8x32xf32> -> vector<8x32xf32>
    %30 = arith.addf %28, %29 : vector<8x32xf32>
    %31 = math.tanh %30 : vector<8x32xf32>
    %32 = arith.addf %25, %31 : vector<8x32xf32>
    %c3_i32 = arith.constant 3 : i32
    %33 = arith.index_cast %c3_i32 : i32 to index
    %c0_22 = arith.constant 0 : index
    %c0_23 = arith.constant 0 : index
    %34 = vector.load %arg7[%33, %c0_22, %c0_23] : memref<8x8x32xf32, #tpu.memory_space<vmem>>, vector<1x8x32xf32>
    %35 = vector.shape_cast %34 : vector<1x8x32xf32> to vector<8x32xf32>
    %cst_24 = arith.constant dense<0.000000e+00> : vector<8x32xf32>
    %36 = tpu.matmul %31, %9, %cst_24 {dimension_numbers = #tpu.dot_dimension_numbers<[1], [0], [0], [1], [0, 0, 1, 1], [], []>} : vector<8x32xf32>, vector<32x32xf32>, vector<8x32xf32> -> vector<8x32xf32>
    %37 = arith.addf %35, %36 : vector<8x32xf32>
    %38 = math.tanh %37 : vector<8x32xf32>
    %39 = arith.addf %32, %38 : vector<8x32xf32>
    %c4_i32 = arith.constant 4 : i32
    %40 = arith.index_cast %c4_i32 : i32 to index
    %c0_25 = arith.constant 0 : index
    %c0_26 = arith.constant 0 : index
    %41 = vector.load %arg7[%40, %c0_25, %c0_26] : memref<8x8x32xf32, #tpu.memory_space<vmem>>, vector<1x8x32xf32>
    %42 = vector.shape_cast %41 : vector<1x8x32xf32> to vector<8x32xf32>
    %cst_27 = arith.constant dense<0.000000e+00> : vector<8x32xf32>
    %43 = tpu.matmul %38, %9, %cst_27 {dimension_numbers = #tpu.dot_dimension_numbers<[1], [0], [0], [1], [0, 0, 1, 1], [], []>} : vector<8x32xf32>, vector<32x32xf32>, vector<8x32xf32> -> vector<8x32xf32>
    %44 = arith.addf %42, %43 : vector<8x32xf32>
    %45 = math.tanh %44 : vector<8x32xf32>
    %46 = arith.addf %39, %45 : vector<8x32xf32>
    %c5_i32 = arith.constant 5 : i32
    %47 = arith.index_cast %c5_i32 : i32 to index
    %c0_28 = arith.constant 0 : index
    %c0_29 = arith.constant 0 : index
    %48 = vector.load %arg7[%47, %c0_28, %c0_29] : memref<8x8x32xf32, #tpu.memory_space<vmem>>, vector<1x8x32xf32>
    %49 = vector.shape_cast %48 : vector<1x8x32xf32> to vector<8x32xf32>
    %cst_30 = arith.constant dense<0.000000e+00> : vector<8x32xf32>
    %50 = tpu.matmul %45, %9, %cst_30 {dimension_numbers = #tpu.dot_dimension_numbers<[1], [0], [0], [1], [0, 0, 1, 1], [], []>} : vector<8x32xf32>, vector<32x32xf32>, vector<8x32xf32> -> vector<8x32xf32>
    %51 = arith.addf %49, %50 : vector<8x32xf32>
    %52 = math.tanh %51 : vector<8x32xf32>
    %53 = arith.addf %46, %52 : vector<8x32xf32>
    %c6_i32 = arith.constant 6 : i32
    %54 = arith.index_cast %c6_i32 : i32 to index
    %c0_31 = arith.constant 0 : index
    %c0_32 = arith.constant 0 : index
    %55 = vector.load %arg7[%54, %c0_31, %c0_32] : memref<8x8x32xf32, #tpu.memory_space<vmem>>, vector<1x8x32xf32>
    %56 = vector.shape_cast %55 : vector<1x8x32xf32> to vector<8x32xf32>
    %cst_33 = arith.constant dense<0.000000e+00> : vector<8x32xf32>
    %57 = tpu.matmul %52, %9, %cst_33 {dimension_numbers = #tpu.dot_dimension_numbers<[1], [0], [0], [1], [0, 0, 1, 1], [], []>} : vector<8x32xf32>, vector<32x32xf32>, vector<8x32xf32> -> vector<8x32xf32>
    %58 = arith.addf %56, %57 : vector<8x32xf32>
    %59 = math.tanh %58 : vector<8x32xf32>
    %60 = arith.addf %53, %59 : vector<8x32xf32>
    %c7_i32 = arith.constant 7 : i32
    %61 = arith.index_cast %c7_i32 : i32 to index
    %c0_34 = arith.constant 0 : index
    %c0_35 = arith.constant 0 : index
    %62 = vector.load %arg7[%61, %c0_34, %c0_35] : memref<8x8x32xf32, #tpu.memory_space<vmem>>, vector<1x8x32xf32>
    %63 = vector.shape_cast %62 : vector<1x8x32xf32> to vector<8x32xf32>
    %cst_36 = arith.constant dense<0.000000e+00> : vector<8x32xf32>
    %64 = tpu.matmul %59, %9, %cst_36 {dimension_numbers = #tpu.dot_dimension_numbers<[1], [0], [0], [1], [0, 0, 1, 1], [], []>} : vector<8x32xf32>, vector<32x32xf32>, vector<8x32xf32> -> vector<8x32xf32>
    %65 = arith.addf %63, %64 : vector<8x32xf32>
    %66 = math.tanh %65 : vector<8x32xf32>
    %67 = arith.addf %60, %66 : vector<8x32xf32>
    %c8_i32 = arith.constant 8 : i32
    %c0_37 = arith.constant 0 : index
    %c0_38 = arith.constant 0 : index
    %68 = vector.load %arg4[%c0_37, %c0_38] : memref<32x128xf32, #tpu.memory_space<vmem>>, vector<32x128xf32>
    %cst_39 = arith.constant dense<0.000000e+00> : vector<8x128xf32>
    %69 = tpu.matmul %67, %68, %cst_39 {dimension_numbers = #tpu.dot_dimension_numbers<[1], [0], [0], [1], [0, 0, 1, 1], [], []>} : vector<8x32xf32>, vector<32x128xf32>, vector<8x128xf32> -> vector<8x128xf32>
    %c0_40 = arith.constant 0 : index
    %c0_41 = arith.constant 0 : index
    %70 = vector.load %arg5[%c0_40, %c0_41] : memref<1x128xf32, #tpu.memory_space<vmem>>, vector<1x128xf32>
    %71 = vector.broadcast %70 : vector<1x128xf32> to vector<8x128xf32>
    %72 = arith.addf %69, %71 : vector<8x128xf32>
    %cst_42 = arith.constant dense<0xFF800000> : vector<8xf32>
    %73 = vector.multi_reduction <maximumf>, %72, %cst_42 [1] : vector<8x128xf32> to vector<8xf32>
    %74 = vector.shape_cast %73 : vector<8xf32> to vector<8x1xf32>
    %75 = vector.broadcast %74 : vector<8x1xf32> to vector<8x128xf32>
    %76 = arith.subf %72, %75 : vector<8x128xf32>
    %77 = math.exp %76 : vector<8x128xf32>
    %cst_43 = arith.constant dense<0.000000e+00> : vector<8xf32>
    %78 = vector.multi_reduction <add>, %77, %cst_43 [1] : vector<8x128xf32> to vector<8xf32>
    %79 = vector.shape_cast %78 : vector<8xf32> to vector<8x1xf32>
    %80 = math.log %79 : vector<8x1xf32>
    %81 = vector.broadcast %80 : vector<8x1xf32> to vector<8x128xf32>
    %82 = arith.subf %76, %81 : vector<8x128xf32>
    %c0_44 = arith.constant 0 : index
    %c0_45 = arith.constant 0 : index
    %83 = vector.load %arg6[%c0_44, %c0_45] : memref<8x128xf32, #tpu.memory_space<vmem>>, vector<8x128xf32>
    tpu.vector_store %arg6[%c0_44, %c0_45], %82 {strides = array<i32>} : memref<8x128xf32, #tpu.memory_space<vmem>>, vector<8x128xf32>,
    return
  }
}

</mosaic_0001>

<llo_original>
// kernel: tpu_custom_call.1
$region0: #{tpu_custom_call.1}
  #allocation0 [shape = 'u32[]', space=smem, size = 0x4, offset = 0x4, fixed_abs, tag = 'smem constant byte address 0x4 - core index']
  #allocation1 [shape = 'u32[144,128]{1,0:T(1,128)}', space=vmem, size = 0x12000, scoped, tag = 'internal scratch']
  #allocation2 [shape = 'f32[8,8,32]{2,1,0:T(8,128)}', space=vmem, size = 0x8000, scoped, tag = 'scratch operand']
  %s0 = inlined_call_operand.hbm [shape: f32[8,8,16], index: 0, kind: input, shape index: {}]
  %s1 = inlined_call_operand.hbm [shape: f32[16,32], index: 1, kind: input, shape index: {}]
  %s2 = inlined_call_operand.hbm [shape: f32[32,32], index: 2, kind: input, shape index: {}]
  %s3 = inlined_call_operand.vmem [shape: f32[1,32], index: 3, kind: input, shape index: {}]
  %s4 = inlined_call_operand.hbm [shape: f32[32,128], index: 4, kind: input, shape index: {}]
  %s5 = inlined_call_operand.vmem [shape: f32[1,128], index: 5, kind: input, shape index: {}]
  %s6 = inlined_call_operand.hbm [shape: f32[8,128], index: 6, kind: output, shape index: {}]
  %s7 = sld [smem:[#allocation0]]
  $region50: #{tpu_custom_call.1} parent=0
    _
  %s9 = ssub.s32 1, %s7
  %s10 = scalar_select 0, %s9, %s7
  $region1: #{tpu_custom_call.1} parent=0
    #allocation3 [shape = 'u8[32768]{0}', space=vmem, size = 0x8000, scoped, tag = 'input window, operand 0, single buffered']
    #allocation4 [shape = 's32[1]{0}', space=sflag, size = 0x4, scoped, tag = 'scoped memory for tpu_custom_call.1']
    #allocation5 [shape = 's32[1]{0}', space=sflag, size = 0x4, scoped, tag = 'scoped memory for tpu_custom_call.1']
    #allocation6 [shape = 'u8[8192]{0}', space=vmem, size = 0x2000, scoped, tag = 'input window, operand 1, single buffered']
    #allocation7 [shape = 's32[1]{0}', space=sflag, size = 0x4, scoped, tag = 'scoped memory for tpu_custom_call.1']
    #allocation8 [shape = 'u8[16384]{0}', space=vmem, size = 0x4000, scoped, tag = 'input window, operand 2, single buffered']
    #allocation9 [shape = 'u8[16384]{0}', space=vmem, size = 0x4000, scoped, tag = 'input window, operand 4, single buffered']
    #allocation10 [shape = 's32[1]{0}', space=sflag, size = 0x4, scoped, tag = 'scoped memory for tpu_custom_call.1']
    #allocation11 [shape = 'u8[4096]{0}', space=vmem, size = 0x1000, scoped, tag = 'output window, operand 0, single buffered']
    %11 = vsyncpa [#allocation4], 0
    %12 = vsyncpa [#allocation7], 0
    %13 = vsyncpa [#allocation10], 0
    %14 = vsyncpa [#allocation5], 0
    // Predicated region
    $region2: #{tpu_custom_call.1} parent=1 // pred_check
      _
    $region3: #{tpu_custom_call.1} parent=1 // pred_check_branch
      %16 = sbr.rel (0) target = $region5
    $region4: #{tpu_custom_call.1} parent=1 // pred_region
      %s18 = ssub.s32 1024, 1024
      %19 = vsyncadd [#allocation4], %s18
      %s20 = sshll.u32 [#allocation3], 4
      %s21 = int_to_ptr.vmem [resolvable:$true] %s20
      %26 = dma.hbm_to_vmem [thread:$0]  %s0, 1024, %s21, [#allocation4], 128, 128, 8
    $region5: #{tpu_custom_call.1} parent=1 // pred_fallthru
      _
    // Predicated region
    $region6: #{tpu_custom_call.1} parent=1 // pred_check
      _
    $region7: #{tpu_custom_call.1} parent=1 // pred_check_branch
      %28 = sbr.rel (0) target = $region9
    $region8: #{tpu_custom_call.1} parent=1 // pred_region
      %s30 = ssub.s32 256, 256
      %31 = vsyncadd [#allocation7], %s30
      %s32 = sshll.u32 [#allocation6], 4
      %s33 = int_to_ptr.vmem [resolvable:$true] %s32
      %38 = dma.hbm_to_vmem [thread:$0]  %s1, 256, %s33, [#allocation7], 128, 128, 8
    $region9: #{tpu_custom_call.1} parent=1 // pred_fallthru
      _
    // Predicated region
    $region10: #{tpu_custom_call.1} parent=1 // pred_check
      _
    $region11: #{tpu_custom_call.1} parent=1 // pred_check_branch
      %40 = sbr.rel (0) target = $region13
    $region12: #{tpu_custom_call.1} parent=1 // pred_region
      %s42 = ssub.s32 512, 512
      %43 = vsyncadd [#allocation7], %s42
      %s44 = sshll.u32 [#allocation8], 4
      %s45 = int_to_ptr.vmem [resolvable:$true] %s44
      %50 = dma.hbm_to_vmem [thread:$0]  %s2, 512, %s45, [#allocation7], 128, 128, 8
    $region13: #{tpu_custom_call.1} parent=1 // pred_fallthru
      _
    // Predicated region
    $region14: #{tpu_custom_call.1} parent=1 // pred_check
      _
    $region15: #{tpu_custom_call.1} parent=1 // pred_check_branch
      %52 = sbr.rel (0) target = $region17
    $region16: #{tpu_custom_call.1} parent=1 // pred_region
      _
    $region17: #{tpu_custom_call.1} parent=1 // pred_fallthru
      _
    // Predicated region
    $region18: #{tpu_custom_call.1} parent=1 // pred_check
      _
    $region19: #{tpu_custom_call.1} parent=1 // pred_check_branch
      %54 = sbr.rel (0) target = $region21
    $region20: #{tpu_custom_call.1} parent=1 // pred_region
      %s56 = ssub.s32 512, 512
      %57 = vsyncadd [#allocation10], %s56
      %s58 = sshll.u32 [#allocation9], 4
      %s59 = int_to_ptr.vmem [resolvable:$true] %s58
      %64 = dma.hbm_to_vmem [thread:$0]  %s4, 512, %s59, [#allocation10], 128, 128, 8
    $region21: #{tpu_custom_call.1} parent=1 // pred_fallthru
      _
    // Predicated region
    $region22: #{tpu_custom_call.1} parent=1 // pred_check
      _
    $region23: #{tpu_custom_call.1} parent=1 // pred_check_branch
      %66 = sbr.rel (0) target = $region25
    $region24: #{tpu_custom_call.1} parent=1 // pred_region
      _
    $region25: #{tpu_custom_call.1} parent=1 // pred_fallthru
      _
    // Predicated region
    $region26: #{tpu_custom_call.1} parent=1 // pred_check
      _
    $region27: #{tpu_custom_call.1} parent=1 // pred_check_branch
      %68 = sbr.rel (0) target = $region29
    $region28: #{tpu_custom_call.1} parent=1 // pred_region
      %69 = dma.done [#allocation4], 1024
    $region29: #{tpu_custom_call.1} parent=1 // pred_fallthru
      _
    // Predicated region
    $region30: #{tpu_custom_call.1} parent=1 // pred_check
      _
    $region31: #{tpu_custom_call.1} parent=1 // pred_check_branch
      %71 = sbr.rel (0) target = $region33
    $region32: #{tpu_custom_call.1} parent=1 // pred_region
      %72 = dma.done [#allocation7], 256
    $region33: #{tpu_custom_call.1} parent=1 // pred_fallthru
      _
    // Predicated region
    $region34: #{tpu_custom_call.1} parent=1 // pred_check
      _
    $region35: #{tpu_custom_call.1} parent=1 // pred_check_branch
      %74 = sbr.rel (0) target = $region37
    $region36: #{tpu_custom_call.1} parent=1 // pred_region
      %75 = dma.done [#allocation7], 512
    $region37: #{tpu_custom_call.1} parent=1 // pred_fallthru
      _
    // Predicated region
    $region38: #{tpu_custom_call.1} parent=1 // pred_check
      _
    $region39: #{tpu_custom_call.1} parent=1 // pred_check_branch
      %77 = sbr.rel (0) target = $region41
    $region40: #{tpu_custom_call.1} parent=1 // pred_region
      %78 = dma.done [#allocation10], 512
    $region41: #{tpu_custom_call.1} parent=1 // pred_fallthru
      _
    %v79 = vld [vmem:[#allocation3] sm:$0xff]
    %v80 = vld [vmem:[#allocation3 + $0x8] sm:$0xff]
    %v81 = vld [vmem:[#allocation3 + $0x10] sm:$0xff]
    %v82 = vld [vmem:[#allocation3 + $0x18] sm:$0xff]
    %v83 = vld [vmem:[#allocation3 + $0x20] sm:$0xff]
    %v84 = vld [vmem:[#allocation3 + $0x28] sm:$0xff]
    %v85 = vld [vmem:[#allocation3 + $0x30] sm:$0xff]
    %v86 = vld [vmem:[#allocation3 + $0x38] sm:$0xff]
    %v87 = vld [vmem:[#allocation6] sm:$0xff]
    %v88 = vld [vmem:[#allocation6 + $0x8] sm:$0xff]
    %v89 = vld [vmem:[%s3] sm:$0x1]
    %v91 = vlaneseq
    %v92 = vshrl.u32 %v91, 7
    %v93 = vsub.s32 0, %v92
    %v94 = vrot.slane %v89, %v93
    %vm96 = vcmask 130048
    %v98 = vsel %vm96, %v79, 0
    %v101 = vsel %vm96, %v80, 0
    %v104 = vsel %vm96, %v81, 0
    %v107 = vsel %vm96, %v82, 0
    %v110 = vsel %vm96, %v83, 0
    %v113 = vsel %vm96, %v84, 0
    %v116 = vsel %vm96, %v85, 0
    %v119 = vsel %vm96, %v86, 0
    %121 = vmatprep.subr.mxu0 0.0
    %122 = vmatpush1.msra.mxu0 %v87
    %123 = vmatprep.subr.mxu0 0.0
    %124 = vmatpush1.msra.mxu0 %v88
    %125 = vmatprep.subr.mxu0 0.0
    %126 = vmatpush1.msra.mxu0 0.0
    %127 = vmatprep.subr.mxu0 0.0
    %128 = vmatpush1.msra.mxu0 0.0
    %129 = vmatprep.subr.mxu0 0.0
    %130 = vmatpush1.msra.mxu0 0.0
    %131 = vmatprep.subr.mxu0 0.0
    %132 = vmatpush1.msra.mxu0 0.0
    %133 = vmatprep.subr.mxu0 0.0
    %134 = vmatpush1.msra.mxu0 0.0
    %135 = vmatprep.subr.mxu0 0.0
    %136 = vmatpush1.msra.mxu0 0.0
    %137 = vmatprep.subr.mxu0 0.0
    %138 = vmatpush1.msra.mxu0 0.0
    %139 = vmatprep.subr.mxu0 0.0
    %140 = vmatpush1.msra.mxu0 0.0
    %141 = vmatprep.subr.mxu0 0.0
    %142 = vmatpush1.msra.mxu0 0.0
    %143 = vmatprep.subr.mxu0 0.0
    %144 = vmatpush1.msra.mxu0 0.0
    %145 = vmatprep.subr.mxu0 0.0
    %146 = vmatpush1.msra.mxu0 0.0
    %147 = vmatprep.subr.mxu0 0.0
    %148 = vmatpush1.msra.mxu0 0.0
    %149 = vmatprep.subr.mxu0 0.0
    %150 = vmatpush1.msra.mxu0 0.0
    %151 = vmatprep.subr.mxu0 0.0
    %152 = vmatpush1.msra.mxu0 0.0
    %153 = vmatprep.subr.mxu0 0.0
    %154 = vmatpush1.msra.mxu0 0.0
    %155 = vmatprep.subr.mxu0 0.0
    %156 = vmatpush1.msra.mxu0 0.0
    %157 = vmatprep.subr.mxu0 0.0
    %158 = vmatpush1.msra.mxu0 0.0
    %159 = vmatprep.subr.mxu0 0.0
    %160 = vmatpush1.msra.mxu0 0.0
    %161 = vmatprep.subr.mxu0 0.0
    %162 = vmatpush1.msra.mxu0 0.0
    %163 = vmatprep.subr.mxu0 0.0
    %164 = vmatpush1.msra.mxu0 0.0
    %165 = vmatprep.subr.mxu0 0.0
    %166 = vmatpush1.msra.mxu0 0.0
    %167 = vmatprep.subr.mxu0 0.0
    %168 = vmatpush1.msra.mxu0 0.0
    %169 = vmatprep.subr.mxu0 0.0
    %170 = vmatpush1.msra.mxu0 0.0
    %171 = vmatprep.subr.mxu0 0.0
    %172 = vmatpush1.msra.mxu0 0.0
    %173 = vmatprep.subr.mxu0 0.0
    %174 = vmatpush1.msra.mxu0 0.0
    %175 = vmatprep.subr.mxu0 0.0
    %176 = vmatpush1.msra.mxu0 0.0
    %177 = vmatprep.subr.mxu0 0.0
    %178 = vmatpush1.msra.mxu0 0.0
    %179 = vmatprep.subr.mxu0 0.0
    %180 = vmatpush1.msra.mxu0 0.0
    %181 = vmatprep.subr.mxu0 0.0
    %182 = vmatpush1.msra.mxu0 0.0
    %183 = vmatprep.subr.mxu0 0.0
    %184 = vmatpush1.msra.mxu0 0.0
    %185 = vmatprep.mubr.f32.mxu0 0.0
    %186 = vmatmul.mubr.f32.gmra.mrb[0].mxu0 %v98
    %v187 = vpop.f32.mrb[0].mxu0
    %v188 = vadd.f32 %v94, %v187
    %v189 = vpop.f32.mrb[0].mxu0
    %190 = vmatprep.mubr.f32.mxu0 0.0
    %191 = vmatmul.mubr.f32.gmra.mrb[0].mxu0 %v101
    %v192 = vpop.f32.mrb[0].mxu0
    %v193 = vadd.f32 %v94, %v192
    %v194 = vpop.f32.mrb[0].mxu0
    %195 = vmatprep.mubr.f32.mxu0 0.0
    %196 = vmatmul.mubr.f32.gmra.mrb[0].mxu0 %v104
    %v197 = vpop.f32.mrb[0].mxu0
    %v198 = vadd.f32 %v94, %v197
    %v199 = vpop.f32.mrb[0].mxu0
    %200 = vmatprep.mubr.f32.mxu0 0.0
    %201 = vmatmul.mubr.f32.gmra.mrb[0].mxu0 %v107
    %v202 = vpop.f32.mrb[0].mxu0
    %v203 = vadd.f32 %v94, %v202
    %v204 = vpop.f32.mrb[0].mxu0
    %205 = vmatprep.mubr.f32.mxu0 0.0
    %206 = vmatmul.mubr.f32.gmra.mrb[0].mxu0 %v110
    %v207 = vpop.f32.mrb[0].mxu0
    %v208 = vadd.f32 %v94, %v207
    %v209 = vpop.f32.mrb[0].mxu0
    %210 = vmatprep.mubr.f32.mxu0 0.0
    %211 = vmatmul.mubr.f32.gmra.mrb[0].mxu0 %v113
    %v212 = vpop.f32.mrb[0].mxu0
    %v213 = vadd.f32 %v94, %v212
    %v214 = vpop.f32.mrb[0].mxu0
    %215 = vmatprep.mubr.f32.mxu0 0.0
    %216 = vmatmul.mubr.f32.gmra.mrb[0].mxu0 %v116
    %v217 = vpop.f32.mrb[0].mxu0
    %v218 = vadd.f32 %v94, %v217
    %v219 = vpop.f32.mrb[0].mxu0
    %220 = vmatprep.mubr.f32.mxu0 0.0
    %221 = vmatmul.mubr.f32.gmra.mrb[0].mxu0 %v119
    %v222 = vpop.f32.mrb[0].mxu0
    %v223 = vadd.f32 %v94, %v222
    %v224 = vpop.f32.mrb[0].mxu0
    %225 = vdwg.mxu0
    %vm226 = vcmask 261120
    %227 = vst.msk [vmem:[#allocation2] sm:$0xff] %vm226, %v188
    %228 = vst.msk [vmem:[#allocation2 + $0x8] sm:$0xff] %vm226, %v193
    %229 = vst.msk [vmem:[#allocation2 + $0x10] sm:$0xff] %vm226, %v198
    %230 = vst.msk [vmem:[#allocation2 + $0x18] sm:$0xff] %vm226, %v203
    %231 = vst.msk [vmem:[#allocation2 + $0x20] sm:$0xff] %vm226, %v208
    %232 = vst.msk [vmem:[#allocation2 + $0x28] sm:$0xff] %vm226, %v213
    %233 = vst.msk [vmem:[#allocation2 + $0x30] sm:$0xff] %vm226, %v218
    %234 = vst.msk [vmem:[#allocation2 + $0x38] sm:$0xff] %vm226, %v223
    %v235 = vld [vmem:[#allocation8] sm:$0xff]
    %v236 = vld [vmem:[#allocation8 + $0x8] sm:$0xff]
    %v237 = vld [vmem:[#allocation8 + $0x10] sm:$0xff]
    %v238 = vld [vmem:[#allocation8 + $0x18] sm:$0xff]
    %v239 = vld [vmem:[#allocation2] sm:$0xff]
    %v241 = vsel %vm226, 0.0, 0
    %243 = vmatprep.subr.mxu0 0.0
    %244 = vmatpush1.msra.mxu0 %v235
    %245 = vmatprep.subr.mxu0 0.0
    %246 = vmatpush1.msra.mxu0 %v236
    %247 = vmatprep.subr.mxu0 0.0
    %248 = vmatpush1.msra.mxu0 %v237
    %249 = vmatprep.subr.mxu0 0.0
    %250 = vmatpush1.msra.mxu0 %v238
    %251 = vmatprep.subr.mxu0 0.0
    %252 = vmatpush1.msra.mxu0 0.0
    %253 = vmatprep.subr.mxu0 0.0
    %254 = vmatpush1.msra.mxu0 0.0
    %255 = vmatprep.subr.mxu0 0.0
    %256 = vmatpush1.msra.mxu0 0.0
    %257 = vmatprep.subr.mxu0 0.0
    %258 = vmatpush1.msra.mxu0 0.0
    %259 = vmatprep.subr.mxu0 0.0
    %260 = vmatpush1.msra.mxu0 0.0
    %261 = vmatprep.subr.mxu0 0.0
    %262 = vmatpush1.msra.mxu0 0.0
    %263 = vmatprep.subr.mxu0 0.0
    %264 = vmatpush1.msra.mxu0 0.0
    %265 = vmatprep.subr.mxu0 0.0
    %266 = vmatpush1.msra.mxu0 0.0
    %267 = vmatprep.subr.mxu0 0.0
    %268 = vmatpush1.msra.mxu0 0.0
    %269 = vmatprep.subr.mxu0 0.0
    %270 = vmatpush1.msra.mxu0 0.0
    %271 = vmatprep.subr.mxu0 0.0
    %272 = vmatpush1.msra.mxu0 0.0
    %273 = vmatprep.subr.mxu0 0.0
    %274 = vmatpush1.msra.mxu0 0.0
    %275 = vmatprep.subr.mxu0 0.0
    %276 = vmatpush1.msra.mxu0 0.0
    %277 = vmatprep.subr.mxu0 0.0
    %278 = vmatpush1.msra.mxu0 0.0
    %279 = vmatprep.subr.mxu0 0.0
    %280 = vmatpush1.msra.mxu0 0.0
    %281 = vmatprep.subr.mxu0 0.0
    %282 = vmatpush1.msra.mxu0 0.0
    %283 = vmatprep.subr.mxu0 0.0
    %284 = vmatpush1.msra.mxu0 0.0
    %285 = vmatprep.subr.mxu0 0.0
    %286 = vmatpush1.msra.mxu0 0.0
    %287 = vmatprep.subr.mxu0 0.0
    %288 = vmatpush1.msra.mxu0 0.0
    %289 = vmatprep.subr.mxu0 0.0
    %290 = vmatpush1.msra.mxu0 0.0
    %291 = vmatprep.subr.mxu0 0.0
    %292 = vmatpush1.msra.mxu0 0.0
    %293 = vmatprep.subr.mxu0 0.0
    %294 = vmatpush1.msra.mxu0 0.0
    %295 = vmatprep.subr.mxu0 0.0
    %296 = vmatpush1.msra.mxu0 0.0
    %297 = vmatprep.subr.mxu0 0.0
    %298 = vmatpush1.msra.mxu0 0.0
    %299 = vmatprep.subr.mxu0 0.0
    %300 = vmatpush1.msra.mxu0 0.0
    %301 = vmatprep.subr.mxu0 0.0
    %302 = vmatpush1.msra.mxu0 0.0
    %303 = vmatprep.subr.mxu0 0.0
    %304 = vmatpush1.msra.mxu0 0.0
    %305 = vmatprep.subr.mxu0 0.0
    %306 = vmatpush1.msra.mxu0 0.0
    %307 = vmatprep.mubr.f32.mxu0 0.0
    %308 = vmatmul.mubr.f32.gmra.mrb[0].mxu0 %v241
    %v309 = vpop.f32.mrb[0].mxu0
    %v310 = vadd.f32 0.0, %v309
    %v311 = vpop.f32.mrb[0].mxu0
    %312 = vdwg.mxu0
    %v313 = vadd.f32 %v239, %v310
    %v314 = vtanh.pop %v313
    %v315 = vadd.f32 %v314, 0.0
    %s316 = scalar_lea.vmem [#allocation2], 8
    %v317 = vld [vmem:[%s316] sm:$0xff]
    %v319 = vsel %vm226, %v314, 0
    %321 = vmatprep.subr.mxu0 0.0
    %322 = vmatpush1.msra.mxu0 %v235
    %323 = vmatprep.subr.mxu0 0.0
    %324 = vmatpush1.msra.mxu0 %v236
    %325 = vmatprep.subr.mxu0 0.0
    %326 = vmatpush1.msra.mxu0 %v237
    %327 = vmatprep.subr.mxu0 0.0
    %328 = vmatpush1.msra.mxu0 %v238
    %329 = vmatprep.subr.mxu0 0.0
    %330 = vmatpush1.msra.mxu0 0.0
    %331 = vmatprep.subr.mxu0 0.0
    %332 = vmatpush1.msra.mxu0 0.0
    %333 = vmatprep.subr.mxu0 0.0
    %334 = vmatpush1.msra.mxu0 0.0
    %335 = vmatprep.subr.mxu0 0.0
    %336 = vmatpush1.msra.mxu0 0.0
    %337 = vmatprep.subr.mxu0 0.0
    %338 = vmatpush1.msra.mxu0 0.0
    %339 = vmatprep.subr.mxu0 0.0
    %340 = vmatpush1.msra.mxu0 0.0
    %341 = vmatprep.subr.mxu0 0.0
    %342 = vmatpush1.msra.mxu0 0.0
    %343 = vmatprep.subr.mxu0 0.0
    %344 = vmatpush1.msra.mxu0 0.0
    %345 = vmatprep.subr.mxu0 0.0
    %346 = vmatpush1.msra.mxu0 0.0
    %347 = vmatprep.subr.mxu0 0.0
    %348 = vmatpush1.msra.mxu0 0.0
    %349 = vmatprep.subr.mxu0 0.0
    %350 = vmatpush1.msra.mxu0 0.0
    %351 = vmatprep.subr.mxu0 0.0
    %352 = vmatpush1.msra.mxu0 0.0
    %353 = vmatprep.subr.mxu0 0.0
    %354 = vmatpush1.msra.mxu0 0.0
    %355 = vmatprep.subr.mxu0 0.0
    %356 = vmatpush1.msra.mxu0 0.0
    %357 = vmatprep.subr.mxu0 0.0
    %358 = vmatpush1.msra.mxu0 0.0
    %359 = vmatprep.subr.mxu0 0.0
    %360 = vmatpush1.msra.mxu0 0.0
    %361 = vmatprep.subr.mxu0 0.0
    %362 = vmatpush1.msra.mxu0 0.0
    %363 = vmatprep.subr.mxu0 0.0
    %364 = vmatpush1.msra.mxu0 0.0
    %365 = vmatprep.subr.mxu0 0.0
    %366 = vmatpush1.msra.mxu0 0.0
    %367 = vmatprep.subr.mxu0 0.0
    %368 = vmatpush1.msra.mxu0 0.0
    %369 = vmatprep.subr.mxu0 0.0
    %370 = vmatpush1.msra.mxu0 0.0
    %371 = vmatprep.subr.mxu0 0.0
    %372 = vmatpush1.msra.mxu0 0.0
    %373 = vmatprep.subr.mxu0 0.0
    %374 = vmatpush1.msra.mxu0 0.0
    %375 = vmatprep.subr.mxu0 0.0
    %376 = vmatpush1.msra.mxu0 0.0
    %377 = vmatprep.subr.mxu0 0.0
    %378 = vmatpush1.msra.mxu0 0.0
    %379 = vmatprep.subr.mxu0 0.0
    %380 = vmatpush1.msra.mxu0 0.0
    %381 = vmatprep.subr.mxu0 0.0
    %382 = vmatpush1.msra.mxu0 0.0
    %383 = vmatprep.subr.mxu0 0.0
    %384 = vmatpush1.msra.mxu0 0.0
    %385 = vmatprep.mubr.f32.mxu0 0.0
    %386 = vmatmul.mubr.f32.gmra.mrb[0].mxu0 %v319
    %v387 = vpop.f32.mrb[0].mxu0
    %v388 = vadd.f32 0.0, %v387
    %v389 = vpop.f32.mrb[0].mxu0
    %390 = vdwg.mxu0
    %v391 = vadd.f32 %v317, %v388
    %v392 = vtanh.pop %v391
    %v393 = vadd.f32 %v315, %v392
    %s394 = scalar_lea.vmem [#allocation2], 16
    %v395 = vld [vmem:[%s394] sm:$0xff]
    %v397 = vsel %vm226, %v392, 0
    %399 = vmatprep.subr.mxu0 0.0
    %400 = vmatpush1.msra.mxu0 %v235
    %401 = vmatprep.subr.mxu0 0.0
    %402 = vmatpush1.msra.mxu0 %v236
    %403 = vmatprep.subr.mxu0 0.0
    %404 = vmatpush1.msra.mxu0 %v237
    %405 = vmatprep.subr.mxu0 0.0
    %406 = vmatpush1.msra.mxu0 %v238
    %407 = vmatprep.subr.mxu0 0.0
    %408 = vmatpush1.msra.mxu0 0.0
    %409 = vmatprep.subr.mxu0 0.0
    %410 = vmatpush1.msra.mxu0 0.0
    %411 = vmatprep.subr.mxu0 0.0
    %412 = vmatpush1.msra.mxu0 0.0
    %413 = vmatprep.subr.mxu0 0.0
    %414 = vmatpush1.msra.mxu0 0.0
    %415 = vmatprep.subr.mxu0 0.0
    %416 = vmatpush1.msra.mxu0 0.0
    %417 = vmatprep.subr.mxu0 0.0
    %418 = vmatpush1.msra.mxu0 0.0
    %419 = vmatprep.subr.mxu0 0.0
    %420 = vmatpush1.msra.mxu0 0.0
    %421 = vmatprep.subr.mxu0 0.0
    %422 = vmatpush1.msra.mxu0 0.0
    %423 = vmatprep.subr.mxu0 0.0
    %424 = vmatpush1.msra.mxu0 0.0
    %425 = vmatprep.subr.mxu0 0.0
    %426 = vmatpush1.msra.mxu0 0.0
    %427 = vmatprep.subr.mxu0 0.0
    %428 = vmatpush1.msra.mxu0 0.0
    %429 = vmatprep.subr.mxu0 0.0
    %430 = vmatpush1.msra.mxu0 0.0
    %431 = vmatprep.subr.mxu0 0.0
    %432 = vmatpush1.msra.mxu0 0.0
    %433 = vmatprep.subr.mxu0 0.0
    %434 = vmatpush1.msra.mxu0 0.0
    %435 = vmatprep.subr.mxu0 0.0
    %436 = vmatpush1.msra.mxu0 0.0
    %437 = vmatprep.subr.mxu0 0.0
    %438 = vmatpush1.msra.mxu0 0.0
    %439 = vmatprep.subr.mxu0 0.0
    %440 = vmatpush1.msra.mxu0 0.0
    %441 = vmatprep.subr.mxu0 0.0
    %442 = vmatpush1.msra.mxu0 0.0
    %443 = vmatprep.subr.mxu0 0.0
    %444 = vmatpush1.msra.mxu0 0.0
    %445 = vmatprep.subr.mxu0 0.0
    %446 = vmatpush1.msra.mxu0 0.0
    %447 = vmatprep.subr.mxu0 0.0
    %448 = vmatpush1.msra.mxu0 0.0
    %449 = vmatprep.subr.mxu0 0.0
    %450 = vmatpush1.msra.mxu0 0.0
    %451 = vmatprep.subr.mxu0 0.0
    %452 = vmatpush1.msra.mxu0 0.0
    %453 = vmatprep.subr.mxu0 0.0
    %454 = vmatpush1.msra.mxu0 0.0
    %455 = vmatprep.subr.mxu0 0.0
    %456 = vmatpush1.msra.mxu0 0.0
    %457 = vmatprep.subr.mxu0 0.0
    %458 = vmatpush1.msra.mxu0 0.0
    %459 = vmatprep.subr.mxu0 0.0
    %460 = vmatpush1.msra.mxu0 0.0
    %461 = vmatprep.subr.mxu0 0.0
    %462 = vmatpush1.msra.mxu0 0.0
    %463 = vmatprep.mubr.f32.mxu0 0.0
    %464 = vmatmul.mubr.f32.gmra.mrb[0].mxu0 %v397
    %v465 = vpop.f32.mrb[0].mxu0
    %v466 = vadd.f32 0.0, %v465
    %v467 = vpop.f32.mrb[0].mxu0
    %468 = vdwg.mxu0
    %v469 = vadd.f32 %v395, %v466
    %v470 = vtanh.pop %v469
    %v471 = vadd.f32 %v393, %v470
    %s472 = scalar_lea.vmem [#allocation2], 24
    %v473 = vld [vmem:[%s472] sm:$0xff]
    %v475 = vsel %vm226, %v470, 0
    %477 = vmatprep.subr.mxu0 0.0
    %478 = vmatpush1.msra.mxu0 %v235
    %479 = vmatprep.subr.mxu0 0.0
    %480 = vmatpush1.msra.mxu0 %v236
    %481 = vmatprep.subr.mxu0 0.0
    %482 = vmatpush1.msra.mxu0 %v237
    %483 = vmatprep.subr.mxu0 0.0
    %484 = vmatpush1.msra.mxu0 %v238
    %485 = vmatprep.subr.mxu0 0.0
    %486 = vmatpush1.msra.mxu0 0.0
    %487 = vmatprep.subr.mxu0 0.0
    %488 = vmatpush1.msra.mxu0 0.0
    %489 = vmatprep.subr.mxu0 0.0
    %490 = vmatpush1.msra.mxu0 0.0
    %491 = vmatprep.subr.mxu0 0.0
    %492 = vmatpush1.msra.mxu0 0.0
    %493 = vmatprep.subr.mxu0 0.0
    %494 = vmatpush1.msra.mxu0 0.0
    %495 = vmatprep.subr.mxu0 0.0
    %496 = vmatpush1.msra.mxu0 0.0
    %497 = vmatprep.subr.mxu0 0.0
    %498 = vmatpush1.msra.mxu0 0.0
    %499 = vmatprep.subr.mxu0 0.0
    %500 = vmatpush1.msra.mxu0 0.0
    %501 = vmatprep.subr.mxu0 0.0
    %502 = vmatpush1.msra.mxu0 0.0
    %503 = vmatprep.subr.mxu0 0.0
    %504 = vmatpush1.msra.mxu0 0.0
    %505 = vmatprep.subr.mxu0 0.0
    %506 = vmatpush1.msra.mxu0 0.0
    %507 = vmatprep.subr.mxu0 0.0
    %508 = vmatpush1.msra.mxu0 0.0
    %509 = vmatprep.subr.mxu0 0.0
    %510 = vmatpush1.msra.mxu0 0.0
    %511 = vmatprep.subr.mxu0 0.0
    %512 = vmatpush1.msra.mxu0 0.0
    %513 = vmatprep.subr.mxu0 0.0
    %514 = vmatpush1.msra.mxu0 0.0
    %515 = vmatprep.subr.mxu0 0.0
    %516 = vmatpush1.msra.mxu0 0.0
    %517 = vmatprep.subr.mxu0 0.0
    %518 = vmatpush1.msra.mxu0 0.0
    %519 = vmatprep.subr.mxu0 0.0
    %520 = vmatpush1.msra.mxu0 0.0
    %521 = vmatprep.subr.mxu0 0.0
    %522 = vmatpush1.msra.mxu0 0.0
    %523 = vmatprep.subr.mxu0 0.0
    %524 = vmatpush1.msra.mxu0 0.0
    %525 = vmatprep.subr.mxu0 0.0
    %526 = vmatpush1.msra.mxu0 0.0
    %527 = vmatprep.subr.mxu0 0.0
    %528 = vmatpush1.msra.mxu0 0.0
    %529 = vmatprep.subr.mxu0 0.0
    %530 = vmatpush1.msra.mxu0 0.0
    %531 = vmatprep.subr.mxu0 0.0
    %532 = vmatpush1.msra.mxu0 0.0
    %533 = vmatprep.subr.mxu0 0.0
    %534 = vmatpush1.msra.mxu0 0.0
    %535 = vmatprep.subr.mxu0 0.0
    %536 = vmatpush1.msra.mxu0 0.0
    %537 = vmatprep.subr.mxu0 0.0
    %538 = vmatpush1.msra.mxu0 0.0
    %539 = vmatprep.subr.mxu0 0.0
    %540 = vmatpush1.msra.mxu0 0.0
    %541 = vmatprep.mubr.f32.mxu0 0.0
    %542 = vmatmul.mubr.f32.gmra.mrb[0].mxu0 %v475
    %v543 = vpop.f32.mrb[0].mxu0
    %v544 = vadd.f32 0.0, %v543
    %v545 = vpop.f32.mrb[0].mxu0
    %546 = vdwg.mxu0
    %v547 = vadd.f32 %v473, %v544
    %v548 = vtanh.pop %v547
    %v549 = vadd.f32 %v471, %v548
    %s550 = scalar_lea.vmem [#allocation2], 32
    %v551 = vld [vmem:[%s550] sm:$0xff]
    %v553 = vsel %vm226, %v548, 0
    %555 = vmatprep.subr.mxu0 0.0
    %556 = vmatpush1.msra.mxu0 %v235
    %557 = vmatprep.subr.mxu0 0.0
    %558 = vmatpush1.msra.mxu0 %v236
    %559 = vmatprep.subr.mxu0 0.0
    %560 = vmatpush1.msra.mxu0 %v237
    %561 = vmatprep.subr.mxu0 0.0
    %562 = vmatpush1.msra.mxu0 %v238
    %563 = vmatprep.subr.mxu0 0.0
    %564 = vmatpush1.msra.mxu0 0.0
    %565 = vmatprep.subr.mxu0 0.0
    %566 = vmatpush1.msra.mxu0 0.0
    %567 = vmatprep.subr.mxu0 0.0
    %568 = vmatpush1.msra.mxu0 0.0
    %569 = vmatprep.subr.mxu0 0.0
    %570 = vmatpush1.msra.mxu0 0.0
    %571 = vmatprep.subr.mxu0 0.0
    %572 = vmatpush1.msra.mxu0 0.0
    %573 = vmatprep.subr.mxu0 0.0
    %574 = vmatpush1.msra.mxu0 0.0
    %575 = vmatprep.subr.mxu0 0.0
    %576 = vmatpush1.msra.mxu0 0.0
    %577 = vmatprep.subr.mxu0 0.0
    %578 = vmatpush1.msra.mxu0 0.0
    %579 = vmatprep.subr.mxu0 0.0
    %580 = vmatpush1.msra.mxu0 0.0
    %581 = vmatprep.subr.mxu0 0.0
    %582 = vmatpush1.msra.mxu0 0.0
    %583 = vmatprep.subr.mxu0 0.0
    %584 = vmatpush1.msra.mxu0 0.0
    %585 = vmatprep.subr.mxu0 0.0
    %586 = vmatpush1.msra.mxu0 0.0
    %587 = vmatprep.subr.mxu0 0.0
    %588 = vmatpush1.msra.mxu0 0.0
    %589 = vmatprep.subr.mxu0 0.0
    %590 = vmatpush1.msra.mxu0 0.0
    %591 = vmatprep.subr.mxu0 0.0
    %592 = vmatpush1.msra.mxu0 0.0
    %593 = vmatprep.subr.mxu0 0.0
    %594 = vmatpush1.msra.mxu0 0.0
    %595 = vmatprep.subr.mxu0 0.0
    %596 = vmatpush1.msra.mxu0 0.0
    %597 = vmatprep.subr.mxu0 0.0
    %598 = vmatpush1.msra.mxu0 0.0
    %599 = vmatprep.subr.mxu0 0.0
    %600 = vmatpush1.msra.mxu0 0.0
    %601 = vmatprep.subr.mxu0 0.0
    %602 = vmatpush1.msra.mxu0 0.0
    %603 = vmatprep.subr.mxu0 0.0
    %604 = vmatpush1.msra.mxu0 0.0
    %605 = vmatprep.subr.mxu0 0.0
    %606 = vmatpush1.msra.mxu0 0.0
    %607 = vmatprep.subr.mxu0 0.0
    %608 = vmatpush1.msra.mxu0 0.0
    %609 = vmatprep.subr.mxu0 0.0
    %610 = vmatpush1.msra.mxu0 0.0
    %611 = vmatprep.subr.mxu0 0.0
    %612 = vmatpush1.msra.mxu0 0.0
    %613 = vmatprep.subr.mxu0 0.0
    %614 = vmatpush1.msra.mxu0 0.0
    %615 = vmatprep.subr.mxu0 0.0
    %616 = vmatpush1.msra.mxu0 0.0
    %617 = vmatprep.subr.mxu0 0.0
    %618 = vmatpush1.msra.mxu0 0.0
    %619 = vmatprep.mubr.f32.mxu0 0.0
    %620 = vmatmul.mubr.f32.gmra.mrb[0].mxu0 %v553
    %v621 = vpop.f32.mrb[0].mxu0
    %v622 = vadd.f32 0.0, %v621
    %v623 = vpop.f32.mrb[0].mxu0
    %624 = vdwg.mxu0
    %v625 = vadd.f32 %v551, %v622
    %v626 = vtanh.pop %v625
    %v627 = vadd.f32 %v549, %v626
    %s628 = scalar_lea.vmem [#allocation2], 40
    %v629 = vld [vmem:[%s628] sm:$0xff]
    %v631 = vsel %vm226, %v626, 0
    %633 = vmatprep.subr.mxu0 0.0
    %634 = vmatpush1.msra.mxu0 %v235
    %635 = vmatprep.subr.mxu0 0.0
    %636 = vmatpush1.msra.mxu0 %v236
    %637 = vmatprep.subr.mxu0 0.0
    %638 = vmatpush1.msra.mxu0 %v237
    %639 = vmatprep.subr.mxu0 0.0
    %640 = vmatpush1.msra.mxu0 %v238
    %641 = vmatprep.subr.mxu0 0.0
    %642 = vmatpush1.msra.mxu0 0.0
    %643 = vmatprep.subr.mxu0 0.0
    %644 = vmatpush1.msra.mxu0 0.0
    %645 = vmatprep.subr.mxu0 0.0
    %646 = vmatpush1.msra.mxu0 0.0
    %647 = vmatprep.subr.mxu0 0.0
    %648 = vmatpush1.msra.mxu0 0.0
    %649 = vmatprep.subr.mxu0 0.0
    %650 = vmatpush1.msra.mxu0 0.0
    %651 = vmatprep.subr.mxu0 0.0
    %652 = vmatpush1.msra.mxu0 0.0
    %653 = vmatprep.subr.mxu0 0.0
    %654 = vmatpush1.msra.mxu0 0.0
    %655 = vmatprep.subr.mxu0 0.0
    %656 = vmatpush1.msra.mxu0 0.0
    %657 = vmatprep.subr.mxu0 0.0
    %658 = vmatpush1.msra.mxu0 0.0
    %659 = vmatprep.subr.mxu0 0.0
    %660 = vmatpush1.msra.mxu0 0.0
    %661 = vmatprep.subr.mxu0 0.0
    %662 = vmatpush1.msra.mxu0 0.0
    %663 = vmatprep.subr.mxu0 0.0
    %664 = vmatpush1.msra.mxu0 0.0
    %665 = vmatprep.subr.mxu0 0.0
    %666 = vmatpush1.msra.mxu0 0.0
    %667 = vmatprep.subr.mxu0 0.0
    %668 = vmatpush1.msra.mxu0 0.0
    %669 = vmatprep.subr.mxu0 0.0
    %670 = vmatpush1.msra.mxu0 0.0
    %671 = vmatprep.subr.mxu0 0.0
    %672 = vmatpush1.msra.mxu0 0.0
    %673 = vmatprep.subr.mxu0 0.0
    %674 = vmatpush1.msra.mxu0 0.0
    %675 = vmatprep.subr.mxu0 0.0
    %676 = vmatpush1.msra.mxu0 0.0
    %677 = vmatprep.subr.mxu0 0.0
    %678 = vmatpush1.msra.mxu0 0.0
    %679 = vmatprep.subr.mxu0 0.0
    %680 = vmatpush1.msra.mxu0 0.0
    %681 = vmatprep.subr.mxu0 0.0
    %682 = vmatpush1.msra.mxu0 0.0
    %683 = vmatprep.subr.mxu0 0.0
    %684 = vmatpush1.msra.mxu0 0.0
    %685 = vmatprep.subr.mxu0 0.0
    %686 = vmatpush1.msra.mxu0 0.0
    %687 = vmatprep.subr.mxu0 0.0
    %688 = vmatpush1.msra.mxu0 0.0
    %689 = vmatprep.subr.mxu0 0.0
    %690 = vmatpush1.msra.mxu0 0.0
    %691 = vmatprep.subr.mxu0 0.0
    %692 = vmatpush1.msra.mxu0 0.0
    %693 = vmatprep.subr.mxu0 0.0
    %694 = vmatpush1.msra.mxu0 0.0
    %695 = vmatprep.subr.mxu0 0.0
    %696 = vmatpush1.msra.mxu0 0.0
    %697 = vmatprep.mubr.f32.mxu0 0.0
    %698 = vmatmul.mubr.f32.gmra.mrb[0].mxu0 %v631
    %v699 = vpop.f32.mrb[0].mxu0
    %v700 = vadd.f32 0.0, %v699
    %v701 = vpop.f32.mrb[0].mxu0
    %702 = vdwg.mxu0
    %v703 = vadd.f32 %v629, %v700
    %v704 = vtanh.pop %v703
    %v705 = vadd.f32 %v627, %v704
    %s706 = scalar_lea.vmem [#allocation2], 48
    %v707 = vld [vmem:[%s706] sm:$0xff]
    %v709 = vsel %vm226, %v704, 0
    %711 = vmatprep.subr.mxu0 0.0
    %712 = vmatpush1.msra.mxu0 %v235
    %713 = vmatprep.subr.mxu0 0.0
    %714 = vmatpush1.msra.mxu0 %v236
    %715 = vmatprep.subr.mxu0 0.0
    %716 = vmatpush1.msra.mxu0 %v237
    %717 = vmatprep.subr.mxu0 0.0
    %718 = vmatpush1.msra.mxu0 %v238
    %719 = vmatprep.subr.mxu0 0.0
    %720 = vmatpush1.msra.mxu0 0.0
    %721 = vmatprep.subr.mxu0 0.0
    %722 = vmatpush1.msra.mxu0 0.0
    %723 = vmatprep.subr.mxu0 0.0
    %724 = vmatpush1.msra.mxu0 0.0
    %725 = vmatprep.subr.mxu0 0.0
    %726 = vmatpush1.msra.mxu0 0.0
    %727 = vmatprep.subr.mxu0 0.0
    %728 = vmatpush1.msra.mxu0 0.0
    %729 = vmatprep.subr.mxu0 0.0
    %730 = vmatpush1.msra.mxu0 0.0
    %731 = vmatprep.subr.mxu0 0.0
    %732 = vmatpush1.msra.mxu0 0.0
    %733 = vmatprep.subr.mxu0 0.0
    %734 = vmatpush1.msra.mxu0 0.0
    %735 = vmatprep.subr.mxu0 0.0
    %736 = vmatpush1.msra.mxu0 0.0
    %737 = vmatprep.subr.mxu0 0.0
    %738 = vmatpush1.msra.mxu0 0.0
    %739 = vmatprep.subr.mxu0 0.0
    %740 = vmatpush1.msra.mxu0 0.0
    %741 = vmatprep.subr.mxu0 0.0
    %742 = vmatpush1.msra.mxu0 0.0
    %743 = vmatprep.subr.mxu0 0.0
    %744 = vmatpush1.msra.mxu0 0.0
    %745 = vmatprep.subr.mxu0 0.0
    %746 = vmatpush1.msra.mxu0 0.0
    %747 = vmatprep.subr.mxu0 0.0
    %748 = vmatpush1.msra.mxu0 0.0
    %749 = vmatprep.subr.mxu0 0.0
    %750 = vmatpush1.msra.mxu0 0.0
    %751 = vmatprep.subr.mxu0 0.0
    %752 = vmatpush1.msra.mxu0 0.0
    %753 = vmatprep.subr.mxu0 0.0
    %754 = vmatpush1.msra.mxu0 0.0
    %755 = vmatprep.subr.mxu0 0.0
    %756 = vmatpush1.msra.mxu0 0.0
    %757 = vmatprep.subr.mxu0 0.0
    %758 = vmatpush1.msra.mxu0 0.0
    %759 = vmatprep.subr.mxu0 0.0
    %760 = vmatpush1.msra.mxu0 0.0
    %761 = vmatprep.subr.mxu0 0.0
    %762 = vmatpush1.msra.mxu0 0.0
    %763 = vmatprep.subr.mxu0 0.0
    %764 = vmatpush1.msra.mxu0 0.0
    %765 = vmatprep.subr.mxu0 0.0
    %766 = vmatpush1.msra.mxu0 0.0
    %767 = vmatprep.subr.mxu0 0.0
    %768 = vmatpush1.msra.mxu0 0.0
    %769 = vmatprep.subr.mxu0 0.0
    %770 = vmatpush1.msra.mxu0 0.0
    %771 = vmatprep.subr.mxu0 0.0
    %772 = vmatpush1.msra.mxu0 0.0
    %773 = vmatprep.subr.mxu0 0.0
    %774 = vmatpush1.msra.mxu0 0.0
    %775 = vmatprep.mubr.f32.mxu0 0.0
    %776 = vmatmul.mubr.f32.gmra.mrb[0].mxu0 %v709
    %v777 = vpop.f32.mrb[0].mxu0
    %v778 = vadd.f32 0.0, %v777
    %v779 = vpop.f32.mrb[0].mxu0
    %780 = vdwg.mxu0
    %v781 = vadd.f32 %v707, %v778
    %v782 = vtanh.pop %v781
    %v783 = vadd.f32 %v705, %v782
    %s784 = scalar_lea.vmem [#allocation2], 56
    %v785 = vld [vmem:[%s784] sm:$0xff]
    %v787 = vsel %vm226, %v782, 0
    %789 = vmatprep.subr.mxu0 0.0
    %790 = vmatpush1.msra.mxu0 %v235
    %791 = vmatprep.subr.mxu0 0.0
    %792 = vmatpush1.msra.mxu0 %v236
    %793 = vmatprep.subr.mxu0 0.0
    %794 = vmatpush1.msra.mxu0 %v237
    %795 = vmatprep.subr.mxu0 0.0
    %796 = vmatpush1.msra.mxu0 %v238
    %797 = vmatprep.subr.mxu0 0.0
    %798 = vmatpush1.msra.mxu0 0.0
    %799 = vmatprep.subr.mxu0 0.0
    %800 = vmatpush1.msra.mxu0 0.0
    %801 = vmatprep.subr.mxu0 0.0
    %802 = vmatpush1.msra.mxu0 0.0
    %803 = vmatprep.subr.mxu0 0.0
    %804 = vmatpush1.msra.mxu0 0.0
    %805 = vmatprep.subr.mxu0 0.0
    %806 = vmatpush1.msra.mxu0 0.0
    %807 = vmatprep.subr.mxu0 0.0
    %808 = vmatpush1.msra.mxu0 0.0
    %809 = vmatprep.subr.mxu0 0.0
    %810 = vmatpush1.msra.mxu0 0.0
    %811 = vmatprep.subr.mxu0 0.0
    %812 = vmatpush1.msra.mxu0 0.0
    %813 = vmatprep.subr.mxu0 0.0
    %814 = vmatpush1.msra.mxu0 0.0
    %815 = vmatprep.subr.mxu0 0.0
    %816 = vmatpush1.msra.mxu0 0.0
    %817 = vmatprep.subr.mxu0 0.0
    %818 = vmatpush1.msra.mxu0 0.0
    %819 = vmatprep.subr.mxu0 0.0
    %820 = vmatpush1.msra.mxu0 0.0
    %821 = vmatprep.subr.mxu0 0.0
    %822 = vmatpush1.msra.mxu0 0.0
    %823 = vmatprep.subr.mxu0 0.0
    %824 = vmatpush1.msra.mxu0 0.0
    %825 = vmatprep.subr.mxu0 0.0
    %826 = vmatpush1.msra.mxu0 0.0
    %827 = vmatprep.subr.mxu0 0.0
    %828 = vmatpush1.msra.mxu0 0.0
    %829 = vmatprep.subr.mxu0 0.0
    %830 = vmatpush1.msra.mxu0 0.0
    %831 = vmatprep.subr.mxu0 0.0
    %832 = vmatpush1.msra.mxu0 0.0
    %833 = vmatprep.subr.mxu0 0.0
    %834 = vmatpush1.msra.mxu0 0.0
    %835 = vmatprep.subr.mxu0 0.0
    %836 = vmatpush1.msra.mxu0 0.0
    %837 = vmatprep.subr.mxu0 0.0
    %838 = vmatpush1.msra.mxu0 0.0
    %839 = vmatprep.subr.mxu0 0.0
    %840 = vmatpush1.msra.mxu0 0.0
    %841 = vmatprep.subr.mxu0 0.0
    %842 = vmatpush1.msra.mxu0 0.0
    %843 = vmatprep.subr.mxu0 0.0
    %844 = vmatpush1.msra.mxu0 0.0
    %845 = vmatprep.subr.mxu0 0.0
    %846 = vmatpush1.msra.mxu0 0.0
    %847 = vmatprep.subr.mxu0 0.0
    %848 = vmatpush1.msra.mxu0 0.0
    %849 = vmatprep.subr.mxu0 0.0
    %850 = vmatpush1.msra.mxu0 0.0
    %851 = vmatprep.subr.mxu0 0.0
    %852 = vmatpush1.msra.mxu0 0.0
    %853 = vmatprep.mubr.f32.mxu0 0.0
    %854 = vmatmul.mubr.f32.gmra.mrb[0].mxu0 %v787
    %v855 = vpop.f32.mrb[0].mxu0
    %v856 = vadd.f32 0.0, %v855
    %v857 = vpop.f32.mrb[0].mxu0
    %858 = vdwg.mxu0
    %v859 = vadd.f32 %v785, %v856
    %v860 = vtanh.pop %v859
    %v861 = vadd.f32 %v783, %v860
    %v862 = vld [vmem:[#allocation9] sm:$0xff]
    %v863 = vld [vmem:[#allocation9 + $0x8] sm:$0xff]
    %v864 = vld [vmem:[#allocation9 + $0x10] sm:$0xff]
    %v865 = vld [vmem:[#allocation9 + $0x18] sm:$0xff]
    %v866 = vld [vmem:[%s5] sm:$0x1]
    %v868 = vlaneseq
    %v869 = vshrl.u32 %v868, 7
    %v870 = vsub.s32 0, %v869
    %v871 = vrot.slane %v866, %v870
    %v874 = vsel %vm226, %v861, 0
    %876 = vmatprep.subr.mxu0 0.0
    %877 = vmatpush1.msra.mxu0 %v862
    %878 = vmatprep.subr.mxu0 0.0
    %879 = vmatpush1.msra.mxu0 %v863
    %880 = vmatprep.subr.mxu0 0.0
    %881 = vmatpush1.msra.mxu0 %v864
    %882 = vmatprep.subr.mxu0 0.0
    %883 = vmatpush1.msra.mxu0 %v865
    %884 = vmatprep.subr.mxu0 0.0
    %885 = vmatpush1.msra.mxu0 0.0
    %886 = vmatprep.subr.mxu0 0.0
    %887 = vmatpush1.msra.mxu0 0.0
    %888 = vmatprep.subr.mxu0 0.0
    %889 = vmatpush1.msra.mxu0 0.0
    %890 = vmatprep.subr.mxu0 0.0
    %891 = vmatpush1.msra.mxu0 0.0
    %892 = vmatprep.subr.mxu0 0.0
    %893 = vmatpush1.msra.mxu0 0.0
    %894 = vmatprep.subr.mxu0 0.0
    %895 = vmatpush1.msra.mxu0 0.0
    %896 = vmatprep.subr.mxu0 0.0
    %897 = vmatpush1.msra.mxu0 0.0
    %898 = vmatprep.subr.mxu0 0.0
    %899 = vmatpush1.msra.mxu0 0.0
    %900 = vmatprep.subr.mxu0 0.0
    %901 = vmatpush1.msra.mxu0 0.0
    %902 = vmatprep.subr.mxu0 0.0
    %903 = vmatpush1.msra.mxu0 0.0
    %904 = vmatprep.subr.mxu0 0.0
    %905 = vmatpush1.msra.mxu0 0.0
    %906 = vmatprep.subr.mxu0 0.0
    %907 = vmatpush1.msra.mxu0 0.0
    %908 = vmatprep.subr.mxu0 0.0
    %909 = vmatpush1.msra.mxu0 0.0
    %910 = vmatprep.subr.mxu0 0.0
    %911 = vmatpush1.msra.mxu0 0.0
    %912 = vmatprep.subr.mxu0 0.0
    %913 = vmatpush1.msra.mxu0 0.0
    %914 = vmatprep.subr.mxu0 0.0
    %915 = vmatpush1.msra.mxu0 0.0
    %916 = vmatprep.subr.mxu0 0.0
    %917 = vmatpush1.msra.mxu0 0.0
    %918 = vmatprep.subr.mxu0 0.0
    %919 = vmatpush1.msra.mxu0 0.0
    %920 = vmatprep.subr.mxu0 0.0
    %921 = vmatpush1.msra.mxu0 0.0
    %922 = vmatprep.subr.mxu0 0.0
    %923 = vmatpush1.msra.mxu0 0.0
    %924 = vmatprep.subr.mxu0 0.0
    %925 = vmatpush1.msra.mxu0 0.0
    %926 = vmatprep.subr.mxu0 0.0
    %927 = vmatpush1.msra.mxu0 0.0
    %928 = vmatprep.subr.mxu0 0.0
    %929 = vmatpush1.msra.mxu0 0.0
    %930 = vmatprep.subr.mxu0 0.0
    %931 = vmatpush1.msra.mxu0 0.0
    %932 = vmatprep.subr.mxu0 0.0
    %933 = vmatpush1.msra.mxu0 0.0
    %934 = vmatprep.subr.mxu0 0.0
    %935 = vmatpush1.msra.mxu0 0.0
    %936 = vmatprep.subr.mxu0 0.0
    %937 = vmatpush1.msra.mxu0 0.0
    %938 = vmatprep.subr.mxu0 0.0
    %939 = vmatpush1.msra.mxu0 0.0
    %940 = vmatprep.mubr.f32.mxu0 0.0
    %941 = vmatmul.mubr.f32.gmra.mrb[0].mxu0 %v874
    %v942 = vpop.f32.mrb[0].mxu0
    %v943 = vadd.f32 %v871, %v942
    %v944 = vpop.f32.mrb[0].mxu0
    %945 = vdwg.mxu0
    %946 = vmax.xlane.f32.xlu0 %v943
    %v947 = vpop.xlane.xlu0 %946
    %v948 = vsub.f32 %v943, %v947
    %v949 = vmul.f32 %v948, 1.442695
    %v950 = vpow.pop %v949
    %951 = vadd.xlane.f32.xlu0 %v950
    %v952 = vpop.xlane.xlu0 %951
    %v953 = vlog2.pop %v952
    %v954 = vmul.f32 %v953, 0.6931472
    %v955 = vsub.f32 %v948, %v954
    %956 = vst [vmem:[#allocation11] sm:$0xff] %v955
    // Predicated region
    $region42: #{tpu_custom_call.1} parent=1 // pred_check
      _
    $region43: #{tpu_custom_call.1} parent=1 // pred_check_branch
      %958 = sbr.rel (0) target = $region45
    $region44: #{tpu_custom_call.1} parent=1 // pred_region
      %s960 = ssub.s32 128, 128
      %961 = vsyncadd [#allocation5], %s960
      %s963 = sshll.u32 [#allocation11], 4
      %s964 = int_to_ptr.vmem [resolvable:$true] %s963
      %966 = dma.vmem_to_hbm [thread:$0]  %s964, 128, %s6, [#allocation5]
    $region45: #{tpu_custom_call.1} parent=1 // pred_fallthru
      _
    // Predicated region
    $region46: #{tpu_custom_call.1} parent=1 // pred_check
      _
    $region47: #{tpu_custom_call.1} parent=1 // pred_check_branch
      %968 = sbr.rel (0) target = $region49
    $region48: #{tpu_custom_call.1} parent=1 // pred_region
      %969 = dma.done [#allocation5], 128
    $region49: #{tpu_custom_call.1} parent=1 // pred_fallthru
      _
    %970 = vsyncpa [#allocation4], 1
    %971 = vsyncpa [#allocation7], 1
    %972 = vsyncpa [#allocation10], 1
    %973 = vsyncpa [#allocation5], 1

</llo_original>
